<compile_context>
chip_gen: v7x
topology: tpu7x:2x2x1
jax: 0.10.0
libtpu: 0.0.40
codegen_flags: <defaults>
</compile_context>

<pallas_src>
import functools

import jax
import jax.numpy as jnp
from jax.experimental import pallas as pl
from jax.experimental.pallas import tpu as pltpu

HPAD = 128  # padded head-output width (lane-dense output slab)


def _fused_mlp_kernel(x_ref, w1_ref, wpack_ref, bpack_ref, out_ref,
                      *, num_floor, num_building, approx_reciprocal):
    f32 = jnp.float32

    def dense(a, w, b):
        # bf16 (or f32) MXU operands, f32 accumulation, f32 bias add.
        return jnp.dot(a.astype(w.dtype), w, preferred_element_type=f32) + b

    x = x_ref[...]
    w1 = w1_ref[...]

    # Packed weights: static, tile-aligned slices of the single weight buffer.
    w2 = wpack_ref[0:128, 0:256]     # concat of 4x (128, 64) layer-2 weights
    w3 = wpack_ref[128:384, 0:128]   # block-diag of 4x (64, 32) layer-3 weights
    wh = wpack_ref[384:512, 0:128]   # block-diag heads -> lane-dense logit slab

    # Packed biases (f32; added to the f32 accumulator).
    bp = bpack_ref[...].astype(f32)
    b1 = bp[0:1, 0:128]
    b2 = bp[1:2, 0:256]
    b3 = bp[2:3, 0:128]
    bh = bp[3:4, 0:128]

    h1 = jnp.maximum(dense(x, w1, b1), 0.0)    # (TB, 128)  shared layer
    h2 = jnp.maximum(dense(h1, w2, b2), 0.0)   # (TB, 256)  [floor|building|long|lat] x 64
    h3 = jnp.maximum(dense(h2, w3, b3), 0.0)   # (TB, 128)  [p|q|r|s] x 32
    logits = dense(h3, wh, bh)                 # (TB, 128)  f32 logit slab

    # --- fused two-segment softmax: ONE exp pass + reciprocal normalization ---
    col = jax.lax.broadcasted_iota(jnp.int32, logits.shape, 1)
    floor_mask = col < num_floor
    softmax_mask = col < num_floor + num_building
    building_mask = softmax_mask & jnp.logical_not(floor_mask)

    neg_inf = jnp.float32(-jnp.inf)
    m_f = jnp.max(jnp.where(floor_mask, logits, neg_inf), axis=-1, keepdims=True)
    m_b = jnp.max(jnp.where(building_mask, logits, neg_inf), axis=-1, keepdims=True)
    m_lane = jnp.where(floor_mask, m_f, m_b)          # per-lane segment max (TB,128)

    # Single masked exp over the slab (regression/pad lanes discarded by the mask).
    e = jnp.where(softmax_mask, jnp.exp(logits - m_lane), 0.0)

    s_f = jnp.sum(jnp.where(floor_mask, e, 0.0), axis=-1, keepdims=True)
    s_b = jnp.sum(e, axis=-1, keepdims=True) - s_f    # building sum = total - floor

    inv_f = pl.reciprocal(s_f, approx=approx_reciprocal)   # (TB,1) — EUP, nearly free
    inv_b = pl.reciprocal(s_b, approx=approx_reciprocal)
    inv_lane = jnp.where(floor_mask, inv_f, inv_b)

    out = jnp.where(softmax_mask, e * inv_lane, logits)
    out_ref[...] = out.astype(out_ref.dtype)


def make_params(key, n_feature, num_floor, num_building, dtype=jnp.float32):
    """Deterministic PyTorch-Linear-style init; weights stored as (in, out)."""
    sizes = {
        "linear": (n_feature, 128),
        "linear2_floor": (128, 64), "linear3_floor": (64, 32),
        "linear2_building": (128, 64), "linear3_building": (64, 32),
        "linear2_long": (128, 64), "linear3_long": (64, 32),
        "linear2_lat": (128, 64), "linear3_lat": (64, 32),
        "l_floor": (32, num_floor),
        "l_building": (32, num_building),
        "l_longitude": (32, 1),
        "l_latitude": (32, 1),
    }
    params = {}
    for name, (fin, fout) in sizes.items():
        key, kw, kb = jax.random.split(key, 3)
        bound = 1.0 / (fin ** 0.5)
        params[name] = (
            jax.random.uniform(kw, (fin, fout), dtype, -bound, bound),
            jax.random.uniform(kb, (1, fout), dtype, -bound, bound),
        )
    return params


def pack_params(params, num_floor, num_building, matmul_dtype=jnp.bfloat16):
    """Fuse the 13 Linear layers into (w1, wpack, bpack) host-side buffers."""
    f32 = jnp.float32
    nf, nb = num_floor, num_building
    assert nf >= 1 and nb >= 1, "num_floor and num_building must be >= 1"
    assert nf + nb + 2 <= HPAD, "num_floor + num_building + 2 must fit in 128 lanes"

    w1, b1 = params["linear"]

    branch2 = ["linear2_floor", "linear2_building", "linear2_long", "linear2_lat"]
    branch3 = ["linear3_floor", "linear3_building", "linear3_long", "linear3_lat"]

    w2 = jnp.concatenate([params[n][0] for n in branch2], axis=1)   # (128, 256)
    b2 = jnp.concatenate([params[n][1] for n in branch2], axis=1)   # (1, 256)

    w3 = jnp.zeros((256, 128), f32)                                 # block-diagonal
    for i, n in enumerate(branch3):
        w3 = w3.at[i * 64:(i + 1) * 64, i * 32:(i + 1) * 32].set(params[n][0])
    b3 = jnp.concatenate([params[n][1] for n in branch3], axis=1)   # (1, 128)

    # Heads (block-diagonal). Latitude head consumes the "long" branch (r) and
    # longitude head the "lat" branch (s), exactly as in the reference module.
    wh = jnp.zeros((128, HPAD), f32)
    bh = jnp.zeros((1, HPAD), f32)
    wh = wh.at[0:32, 0:nf].set(params["l_floor"][0])
    bh = bh.at[:, 0:nf].set(params["l_floor"][1])
    wh = wh.at[32:64, nf:nf + nb].set(params["l_building"][0])
    bh = bh.at[:, nf:nf + nb].set(params["l_building"][1])
    wh = wh.at[64:96, nf + nb:nf + nb + 1].set(params["l_latitude"][0])
    bh = bh.at[:, nf + nb:nf + nb + 1].set(params["l_latitude"][1])
    wh = wh.at[96:128, nf + nb + 1:nf + nb + 2].set(params["l_longitude"][0])
    bh = bh.at[:, nf + nb + 1:nf + nb + 2].set(params["l_longitude"][1])

    wpack = jnp.zeros((512, 256), f32)
    wpack = wpack.at[0:128, 0:256].set(w2)
    wpack = wpack.at[128:384, 0:128].set(w3)
    wpack = wpack.at[384:512, 0:HPAD].set(wh)

    bpack = jnp.zeros((4, 256), f32)
    bpack = bpack.at[0, 0:128].set(b1[0])
    bpack = bpack.at[1, 0:256].set(b2[0])
    bpack = bpack.at[2, 0:128].set(b3[0])
    bpack = bpack.at[3, 0:HPAD].set(bh[0])

    # Biases stay f32 (added to the f32 MXU accumulator); only matmul operands cast.
    return w1.astype(matmul_dtype), wpack.astype(matmul_dtype), bpack


def _cdiv(a, m):
    return -(-a // m)


def _round_up(a, m):
    return _cdiv(a, m) * m


def _choose_batch_tiling(B, block_b):
    """Padding-aware batch tiling.

    Splits B into n_tiles roughly-equal tiles of at most ~block_b rows so that
    pad_b - B < 8 * n_tiles (instead of wasting up to a whole block_b of padded
    rows), and for large B forces an even grid >= 2 so both v7x TensorCores get
    work under dimension_semantics=("parallel",).
    """
    n_tiles = max(1, _cdiv(B, block_b))
    if B >= 512:                       # large enough to split across 2 TCs (v7x)
        n_tiles = max(n_tiles, 2)
        n_tiles += n_tiles % 2         # even tile count -> even per-core split
    tb = _round_up(_cdiv(B, n_tiles), 8)   # multiple of 8 sublanes
    pad_b = n_tiles * tb
    return tb, n_tiles, pad_b


def model_forward(x, params, num_floor, num_building, *, block_b=1024,
                  matmul_dtype=jnp.bfloat16, out_dtype=jnp.float32,
                  approx_reciprocal=None):
    """Fused forward pass.

    matmul_dtype=jnp.bfloat16 (default) uses the native bf16 MXU path on
    v5e/v6e/v7x with f32 accumulation; pass jnp.float32 for exact semantics.
    out_dtype=jnp.bfloat16 halves output HBM traffic (useful on v5e) if the
    downstream tolerance allows it.  block_b ~ 512..2048 all fit comfortably in
    VMEM (<4 MiB at 2048, well under v7x's 32 MiB scoped default).
    """
    B, n_feature = x.shape
    assert num_floor >= 1 and num_building >= 1
    if approx_reciprocal is None:
        # Approx EUP reciprocal on the bf16 perf path; exact 1/x on the f32 path.
        approx_reciprocal = jnp.dtype(matmul_dtype) != jnp.dtype(jnp.float32)

    w1, wpack, bpack = pack_params(params, num_floor, num_building, matmul_dtype)

    tb, n_tiles, pad_b = _choose_batch_tiling(B, block_b)
    xp = x if pad_b == B else jnp.pad(x, ((0, pad_b - B), (0, 0)))
    xp = xp.astype(matmul_dtype)

    kernel = functools.partial(
        _fused_mlp_kernel, num_floor=num_floor, num_building=num_building,
        approx_reciprocal=approx_reciprocal)

    slab = pl.pallas_call(
        kernel,
        out_shape=jax.ShapeDtypeStruct((pad_b, HPAD), out_dtype),
        grid_spec=pltpu.PrefetchScalarGridSpec(
            num_scalar_prefetch=0,
            grid=(n_tiles,),
            in_specs=[
                pl.BlockSpec((tb, n_feature), lambda i: (i, 0)),    # x tile
                pl.BlockSpec((n_feature, 128), lambda i: (0, 0)),   # w1 (resident)
                pl.BlockSpec((512, 256), lambda i: (0, 0)),         # packed weights
                pl.BlockSpec((4, 256), lambda i: (0, 0)),           # packed biases (f32)
            ],
            out_specs=pl.BlockSpec((tb, HPAD), lambda i: (i, 0)),
        ),
        # "parallel" lets the batch grid shard across v7x's two TensorCores; if
        # profiling shows one idle TC, escalate to pltpu.CORE_PARALLEL here.
        compiler_params=pltpu.CompilerParams(
            dimension_semantics=("parallel",)),
    )(xp, w1, wpack, bpack)

    slab = slab[:B]
    nf, nb = num_floor, num_building
    floor = slab[:, 0:nf]
    building = slab[:, nf:nf + nb]
    latitude = slab[:, nf + nb:nf + nb + 1]
    longitude = slab[:, nf + nb + 1:nf + nb + 2]
    return floor, building, latitude, longitude


def model_forward_ref(x, params):
    def dense(h, name, relu):
        w, b = params[name]
        y = h @ w + b
        return jnp.maximum(y, 0.0) if relu else y

    h = dense(x, "linear", True)
    p = dense(dense(h, "linear2_floor", True), "linear3_floor", True)
    q = dense(dense(h, "linear2_building", True), "linear3_building", True)
    r = dense(dense(h, "linear2_long", True), "linear3_long", True)
    s = dense(dense(h, "linear2_lat", True), "linear3_lat", True)
    floor = jax.nn.softmax(dense(p, "l_floor", False), axis=1)
    building = jax.nn.softmax(dense(q, "l_building", False), axis=1)
    latitude = dense(r, "l_latitude", False)
    longitude = dense(s, "l_longitude", False)
    return floor, building, latitude, longitude


if __name__ == "__main__":
    n_feature, num_floor, num_building = 32, 5, 3
    B = 2

    key = jax.random.PRNGKey(0)
    key, kx = jax.random.split(key)
    x = jax.random.normal(kx, (B, n_feature), jnp.float32)
    params = make_params(key, n_feature, num_floor, num_building)

    refs = model_forward_ref(x, params)

    # Exact-semantics validation path: f32 MXU operands, exact reciprocal.
    outs_f32 = model_forward(x, params, num_floor, num_building,
                             matmul_dtype=jnp.float32)
    outs_f32 = jax.block_until_ready(outs_f32)
    for o, r in zip(outs_f32, refs):
        assert o.shape == r.shape and o.dtype == r.dtype
        assert jnp.allclose(o, r, atol=1e-5, rtol=1e-5)

    # Performance path (default): bf16 MXU operands + approx EUP reciprocal.
    outs = model_forward(x, params, num_floor, num_building)
    outs = jax.block_until_ready(outs)
    for o, r in zip(outs, refs):
        assert o.shape == r.shape and o.dtype == jnp.float32
        assert jnp.allclose(o, r, atol=5e-2, rtol=5e-2)

    print("KERNEL_OK")
</pallas_src>

<mosaic_0001>
module attributes {stable_mosaic.version = 11 : i64} {
  func.func @_fused_mlp_kernel(%arg0: i32, %arg1: memref<8x32xf32, #tpu.memory_space<vmem>>, %arg2: memref<32x128xf32, #tpu.memory_space<vmem>>, %arg3: memref<512x256xf32, #tpu.memory_space<vmem>>, %arg4: memref<4x256xf32, #tpu.memory_space<vmem>>, %arg5: memref<8x128xf32, #tpu.memory_space<vmem>>) attributes {dimension_semantics = [#tpu.dimension_semantics<parallel>], iteration_bounds = array<i64: 1>, scalar_prefetch = 0 : i64, scratch_operands = 0 : i64, tpu.core_type = #tpu.core_type<tc>, window_params = [{transform_indices = @transform_0, window_bounds = array<i64: 8, 32>}, {pipeline_mode = #tpu.pipeline_mode<synchronous>, transform_indices = @transform_1, window_bounds = array<i64: 32, 128>}, {pipeline_mode = #tpu.pipeline_mode<synchronous>, transform_indices = @transform_2, window_bounds = array<i64: 512, 256>}, {pipeline_mode = #tpu.pipeline_mode<synchronous>, transform_indices = @transform_3, window_bounds = array<i64: 4, 256>}, {transform_indices = @transform_4, window_bounds = array<i64: 8, 128>}]} {
    %c0 = arith.constant 0 : index
    %c0_0 = arith.constant 0 : index
    %0 = vector.load %arg1[%c0, %c0_0] : memref<8x32xf32, #tpu.memory_space<vmem>>, vector<8x32xf32>
    %c0_1 = arith.constant 0 : index
    %c0_2 = arith.constant 0 : index
    %1 = vector.load %arg2[%c0_1, %c0_2] : memref<32x128xf32, #tpu.memory_space<vmem>>, vector<32x128xf32>
    %c0_3 = arith.constant 0 : index
    %c0_4 = arith.constant 0 : index
    %2 = vector.load %arg3[%c0_3, %c0_4] : memref<512x256xf32, #tpu.memory_space<vmem>>, vector<128x256xf32>
    %c128 = arith.constant 128 : index
    %c0_5 = arith.constant 0 : index
    %3 = vector.load %arg3[%c128, %c0_5] : memref<512x256xf32, #tpu.memory_space<vmem>>, vector<256x128xf32>
    %c384 = arith.constant 384 : index
    %c0_6 = arith.constant 0 : index
    %4 = vector.load %arg3[%c384, %c0_6] : memref<512x256xf32, #tpu.memory_space<vmem>>, vector<128x128xf32>
    %c0_7 = arith.constant 0 : index
    %c0_8 = arith.constant 0 : index
    %5 = vector.load %arg4[%c0_7, %c0_8] : memref<4x256xf32, #tpu.memory_space<vmem>>, vector<4x256xf32>
    %6 = vector.extract_strided_slice %5 {offsets = [0, 0], sizes = [1, 128], strides = [1, 1]} : vector<4x256xf32> to vector<1x128xf32>
    %7 = vector.extract_strided_slice %5 {offsets = [1, 0], sizes = [1, 256], strides = [1, 1]} : vector<4x256xf32> to vector<1x256xf32>
    %8 = vector.extract_strided_slice %5 {offsets = [2, 0], sizes = [1, 128], strides = [1, 1]} : vector<4x256xf32> to vector<1x128xf32>
    %9 = vector.extract_strided_slice %5 {offsets = [3, 0], sizes = [1, 128], strides = [1, 1]} : vector<4x256xf32> to vector<1x128xf32>
    %cst = arith.constant dense<0.000000e+00> : vector<8x128xf32>
    %10 = tpu.matmul %0, %1, %cst {dimension_numbers = #tpu.dot_dimension_numbers<[1], [0], [0], [1], [0, 0, 1, 1], [], []>} : vector<8x32xf32>, vector<32x128xf32>, vector<8x128xf32> -> vector<8x128xf32>
    %11 = vector.broadcast %6 : vector<1x128xf32> to vector<8x128xf32>
    %12 = arith.addf %10, %11 : vector<8x128xf32>
    %cst_9 = arith.constant 0.000000e+00 : f32
    %13 = vector.broadcast %cst_9 : f32 to vector<8x128xf32>
    %14 = arith.maximumf %12, %13 : vector<8x128xf32>
    %cst_10 = arith.constant dense<0.000000e+00> : vector<8x256xf32>
    %15 = tpu.matmul %14, %2, %cst_10 {dimension_numbers = #tpu.dot_dimension_numbers<[1], [0], [0], [1], [0, 0, 1, 1], [], []>} : vector<8x128xf32>, vector<128x256xf32>, vector<8x256xf32> -> vector<8x256xf32>
    %16 = vector.broadcast %7 : vector<1x256xf32> to vector<8x256xf32>
    %17 = arith.addf %15, %16 : vector<8x256xf32>
    %cst_11 = arith.constant 0.000000e+00 : f32
    %18 = vector.broadcast %cst_11 : f32 to vector<8x256xf32>
    %19 = arith.maximumf %17, %18 : vector<8x256xf32>
    %cst_12 = arith.constant dense<0.000000e+00> : vector<8x128xf32>
    %20 = tpu.matmul %19, %3, %cst_12 {dimension_numbers = #tpu.dot_dimension_numbers<[1], [0], [0], [1], [0, 0, 1, 1], [], []>} : vector<8x256xf32>, vector<256x128xf32>, vector<8x128xf32> -> vector<8x128xf32>
    %21 = vector.broadcast %8 : vector<1x128xf32> to vector<8x128xf32>
    %22 = arith.addf %20, %21 : vector<8x128xf32>
    %cst_13 = arith.constant 0.000000e+00 : f32
    %23 = vector.broadcast %cst_13 : f32 to vector<8x128xf32>
    %24 = arith.maximumf %22, %23 : vector<8x128xf32>
    %cst_14 = arith.constant dense<0.000000e+00> : vector<8x128xf32>
    %25 = tpu.matmul %24, %4, %cst_14 {dimension_numbers = #tpu.dot_dimension_numbers<[1], [0], [0], [1], [0, 0, 1, 1], [], []>} : vector<8x128xf32>, vector<128x128xf32>, vector<8x128xf32> -> vector<8x128xf32>
    %26 = vector.broadcast %9 : vector<1x128xf32> to vector<8x128xf32>
    %27 = arith.addf %25, %26 : vector<8x128xf32>
    %28 = tpu.iota {dimensions = array<i32: 1>} : vector<8x128xi32>
    %c5_i32 = arith.constant 5 : i32
    %29 = vector.broadcast %c5_i32 : i32 to vector<8x128xi32>
    %30 = arith.cmpi slt, %28, %29 : vector<8x128xi32>
    %c8_i32 = arith.constant 8 : i32
    %31 = vector.broadcast %c8_i32 : i32 to vector<8x128xi32>
    %32 = arith.cmpi slt, %28, %31 : vector<8x128xi32>
    %cst_15 = arith.constant dense<true> : vector<8x128xi1>
    %33 = arith.xori %30, %cst_15 : vector<8x128xi1>
    %34 = arith.andi %32, %33 : vector<8x128xi1>
    %cst_16 = arith.constant 0xFF800000 : f32
    %35 = vector.broadcast %cst_16 : f32 to vector<8x128xf32>
    %36 = arith.select %30, %27, %35 : vector<8x128xi1>, vector<8x128xf32>
    %cst_17 = arith.constant dense<0xFF800000> : vector<8xf32>
    %37 = vector.multi_reduction <maximumf>, %36, %cst_17 [1] : vector<8x128xf32> to vector<8xf32>
    %38 = vector.shape_cast %37 : vector<8xf32> to vector<8x1xf32>
    %cst_18 = arith.constant 0xFF800000 : f32
    %39 = vector.broadcast %cst_18 : f32 to vector<8x128xf32>
    %40 = arith.select %34, %27, %39 : vector<8x128xi1>, vector<8x128xf32>
    %cst_19 = arith.constant dense<0xFF800000> : vector<8xf32>
    %41 = vector.multi_reduction <maximumf>, %40, %cst_19 [1] : vector<8x128xf32> to vector<8xf32>
    %42 = vector.shape_cast %41 : vector<8xf32> to vector<8x1xf32>
    %43 = vector.shape_cast %38 : vector<8x1xf32> to vector<8x1xf32>
    %44 = vector.broadcast %43 : vector<8x1xf32> to vector<8x128xf32>
    %45 = vector.shape_cast %42 : vector<8x1xf32> to vector<8x1xf32>
    %46 = vector.broadcast %45 : vector<8x1xf32> to vector<8x128xf32>
    %47 = arith.select %30, %44, %46 : vector<8x128xi1>, vector<8x128xf32>
    %48 = arith.subf %27, %47 : vector<8x128xf32>
    %49 = math.exp %48 : vector<8x128xf32>
    %cst_20 = arith.constant 0.000000e+00 : f32
    %50 = vector.broadcast %cst_20 : f32 to vector<8x128xf32>
    %51 = arith.select %32, %49, %50 : vector<8x128xi1>, vector<8x128xf32>
    %cst_21 = arith.constant 0.000000e+00 : f32
    %52 = vector.broadcast %cst_21 : f32 to vector<8x128xf32>
    %53 = arith.select %30, %51, %52 : vector<8x128xi1>, vector<8x128xf32>
    %cst_22 = arith.constant dense<0.000000e+00> : vector<8xf32>
    %54 = vector.multi_reduction <add>, %53, %cst_22 [1] : vector<8x128xf32> to vector<8xf32>
    %55 = vector.shape_cast %54 : vector<8xf32> to vector<8x1xf32>
    %cst_23 = arith.constant dense<0.000000e+00> : vector<8xf32>
    %56 = vector.multi_reduction <add>, %51, %cst_23 [1] : vector<8x128xf32> to vector<8xf32>
    %57 = vector.shape_cast %56 : vector<8xf32> to vector<8x1xf32>
    %58 = arith.subf %57, %55 : vector<8x1xf32>
    %59 = tpu.reciprocal %55 : vector<8x1xf32> -> vector<8x1xf32>
    %60 = tpu.reciprocal %58 : vector<8x1xf32> -> vector<8x1xf32>
    %61 = vector.shape_cast %59 : vector<8x1xf32> to vector<8x1xf32>
    %62 = vector.broadcast %61 : vector<8x1xf32> to vector<8x128xf32>
    %63 = vector.shape_cast %60 : vector<8x1xf32> to vector<8x1xf32>
    %64 = vector.broadcast %63 : vector<8x1xf32> to vector<8x128xf32>
    %65 = arith.select %30, %62, %64 : vector<8x128xi1>, vector<8x128xf32>
    %66 = arith.mulf %51, %65 : vector<8x128xf32>
    %67 = arith.select %32, %66, %27 : vector<8x128xi1>, vector<8x128xf32>
    %c0_24 = arith.constant 0 : index
    %c0_25 = arith.constant 0 : index
    %68 = vector.load %arg5[%c0_24, %c0_25] : memref<8x128xf32, #tpu.memory_space<vmem>>, vector<8x128xf32>
    tpu.vector_store %arg5[%c0_24, %c0_25], %67 {strides = array<i32>} : memref<8x128xf32, #tpu.memory_space<vmem>>, vector<8x128xf32>,
    return
  }
  func.func @transform_0(%arg0: i32) -> (i32, i32) {
    %c0_i32 = arith.constant 0 : i32
    %c0_i32_0 = arith.constant 0 : i32
    return %arg0, %c0_i32 : i32, i32
  }
  func.func @transform_1(%arg0: i32) -> (i32, i32) {
    %c0_i32 = arith.constant 0 : i32
    %c0_i32_0 = arith.constant 0 : i32
    %c0_i32_1 = arith.constant 0 : i32
    return %c0_i32, %c0_i32_0 : i32, i32
  }
  func.func @transform_2(%arg0: i32) -> (i32, i32) {
    %c0_i32 = arith.constant 0 : i32
    %c0_i32_0 = arith.constant 0 : i32
    %c0_i32_1 = arith.constant 0 : i32
    return %c0_i32, %c0_i32_0 : i32, i32
  }
  func.func @transform_3(%arg0: i32) -> (i32, i32) {
    %c0_i32 = arith.constant 0 : i32
    %c0_i32_0 = arith.constant 0 : i32
    %c0_i32_1 = arith.constant 0 : i32
    return %c0_i32, %c0_i32_0 : i32, i32
  }
  func.func @transform_4(%arg0: i32) -> (i32, i32) {
    %c0_i32 = arith.constant 0 : i32
    %c0_i32_0 = arith.constant 0 : i32
    return %arg0, %c0_i32 : i32, i32
  }
}

</mosaic_0001>

<llo_original>
// kernel: tpu_custom_call.1
$region0: #{tpu_custom_call.1}
  #allocation0 [shape = 'u32[]', space=smem, size = 0x4, offset = 0x4, fixed_abs, tag = 'smem constant byte address 0x4 - core index']
  #allocation1 [shape = 'u32[144,128]{1,0:T(1,128)}', space=vmem, size = 0x12000, scoped, tag = 'internal scratch']
  %s0 = inlined_call_operand.hbm [shape: f32[8,32], index: 0, kind: input, shape index: {}]
  %s1 = inlined_call_operand.hbm [shape: f32[32,128], index: 1, kind: input, shape index: {}]
  %s2 = inlined_call_operand.hbm [shape: f32[512,256], index: 2, kind: input, shape index: {}]
  %s3 = inlined_call_operand.vmem [shape: f32[4,256], index: 3, kind: input, shape index: {}]
  %s4 = inlined_call_operand.hbm [shape: f32[8,128], index: 4, kind: output, shape index: {}]
  %s5 = sld [smem:[#allocation0]]
  $region38: #{tpu_custom_call.1} parent=0
    _
  %s7 = ssub.s32 1, %s5
  %s8 = scalar_select 0, %s7, %s5
  $region1: #{tpu_custom_call.1} parent=0
    #allocation2 [shape = 'u8[4096]{0}', space=vmem, size = 0x1000, scoped, tag = 'input window, operand 0, single buffered']
    #allocation3 [shape = 's32[1]{0}', space=sflag, size = 0x4, scoped, tag = 'scoped memory for tpu_custom_call.1']
    #allocation4 [shape = 's32[1]{0}', space=sflag, size = 0x4, scoped, tag = 'scoped memory for tpu_custom_call.1']
    #allocation5 [shape = 'u8[16384]{0}', space=vmem, size = 0x4000, scoped, tag = 'input window, operand 1, single buffered']
    #allocation6 [shape = 's32[1]{0}', space=sflag, size = 0x4, scoped, tag = 'scoped memory for tpu_custom_call.1']
    #allocation7 [shape = 'u8[524288]{0}', space=vmem, size = 0x80000, scoped, tag = 'input window, operand 2, single buffered']
    #allocation8 [shape = 'u8[4096]{0}', space=vmem, size = 0x1000, scoped, tag = 'output window, operand 0, single buffered']
    %9 = vsyncpa [#allocation3], 0
    %10 = vsyncpa [#allocation6], 0
    %11 = vsyncpa [#allocation4], 0
    // Predicated region
    $region2: #{tpu_custom_call.1} parent=1 // pred_check
      _
    $region3: #{tpu_custom_call.1} parent=1 // pred_check_branch
      %13 = sbr.rel (0) target = $region5
    $region4: #{tpu_custom_call.1} parent=1 // pred_region
      %s15 = ssub.s32 128, 128
      %16 = vsyncadd [#allocation3], %s15
      %s18 = sshll.u32 [#allocation2], 4
      %s19 = int_to_ptr.vmem [resolvable:$true] %s18
      %21 = dma.hbm_to_vmem [thread:$0]  %s0, 128, %s19, [#allocation3]
    $region5: #{tpu_custom_call.1} parent=1 // pred_fallthru
      _
    // Predicated region
    $region6: #{tpu_custom_call.1} parent=1 // pred_check
      _
    $region7: #{tpu_custom_call.1} parent=1 // pred_check_branch
      %23 = sbr.rel (0) target = $region9
    $region8: #{tpu_custom_call.1} parent=1 // pred_region
      %s25 = ssub.s32 512, 512
      %26 = vsyncadd [#allocation6], %s25
      %s27 = sshll.u32 [#allocation5], 4
      %s28 = int_to_ptr.vmem [resolvable:$true] %s27
      %33 = dma.hbm_to_vmem [thread:$0]  %s1, 512, %s28, [#allocation6], 128, 128, 8
    $region9: #{tpu_custom_call.1} parent=1 // pred_fallthru
      _
    // Predicated region
    $region10: #{tpu_custom_call.1} parent=1 // pred_check
      _
    $region11: #{tpu_custom_call.1} parent=1 // pred_check_branch
      %35 = sbr.rel (0) target = $region13
    $region12: #{tpu_custom_call.1} parent=1 // pred_region
      %s37 = ssub.s32 16384, 16384
      %38 = vsyncadd [#allocation6], %s37
      %s39 = sshll.u32 [#allocation7], 4
      %s40 = int_to_ptr.vmem [resolvable:$true] %s39
      %45 = dma.hbm_to_vmem [thread:$0]  %s2, 16384, %s40, [#allocation6], 256, 256, 16
    $region13: #{tpu_custom_call.1} parent=1 // pred_fallthru
      _
    // Predicated region
    $region14: #{tpu_custom_call.1} parent=1 // pred_check
      _
    $region15: #{tpu_custom_call.1} parent=1 // pred_check_branch
      %47 = sbr.rel (0) target = $region17
    $region16: #{tpu_custom_call.1} parent=1 // pred_region
      _
    $region17: #{tpu_custom_call.1} parent=1 // pred_fallthru
      _
    // Predicated region
    $region18: #{tpu_custom_call.1} parent=1 // pred_check
      _
    $region19: #{tpu_custom_call.1} parent=1 // pred_check_branch
      %49 = sbr.rel (0) target = $region21
    $region20: #{tpu_custom_call.1} parent=1 // pred_region
      %50 = dma.done [#allocation3], 128
    $region21: #{tpu_custom_call.1} parent=1 // pred_fallthru
      _
    // Predicated region
    $region22: #{tpu_custom_call.1} parent=1 // pred_check
      _
    $region23: #{tpu_custom_call.1} parent=1 // pred_check_branch
      %52 = sbr.rel (0) target = $region25
    $region24: #{tpu_custom_call.1} parent=1 // pred_region
      %53 = dma.done [#allocation6], 512
    $region25: #{tpu_custom_call.1} parent=1 // pred_fallthru
      _
    // Predicated region
    $region26: #{tpu_custom_call.1} parent=1 // pred_check
      _
    $region27: #{tpu_custom_call.1} parent=1 // pred_check_branch
      %55 = sbr.rel (0) target = $region29
    $region28: #{tpu_custom_call.1} parent=1 // pred_region
      %56 = dma.done [#allocation6], 16384
    $region29: #{tpu_custom_call.1} parent=1 // pred_fallthru
      _
    %v57 = vld [vmem:[#allocation2] sm:$0xff]
    %v58 = vld [vmem:[#allocation5] sm:$0xff]
    %v59 = vld [vmem:[#allocation5 + $0x8] sm:$0xff]
    %v60 = vld [vmem:[#allocation5 + $0x10] sm:$0xff]
    %v61 = vld [vmem:[#allocation5 + $0x18] sm:$0xff]
    %v62 = vld [vmem:[#allocation7] sm:$0xff]
    %v63 = vld [vmem:[#allocation7 + $0x8] sm:$0xff]
    %v64 = vld [vmem:[#allocation7 + $0x10] sm:$0xff]
    %v65 = vld [vmem:[#allocation7 + $0x18] sm:$0xff]
    %v66 = vld [vmem:[#allocation7 + $0x20] sm:$0xff]
    %v67 = vld [vmem:[#allocation7 + $0x28] sm:$0xff]
    %v68 = vld [vmem:[#allocation7 + $0x30] sm:$0xff]
    %v69 = vld [vmem:[#allocation7 + $0x38] sm:$0xff]
    %v70 = vld [vmem:[#allocation7 + $0x40] sm:$0xff]
    %v71 = vld [vmem:[#allocation7 + $0x48] sm:$0xff]
    %v72 = vld [vmem:[#allocation7 + $0x50] sm:$0xff]
    %v73 = vld [vmem:[#allocation7 + $0x58] sm:$0xff]
    %v74 = vld [vmem:[#allocation7 + $0x60] sm:$0xff]
    %v75 = vld [vmem:[#allocation7 + $0x68] sm:$0xff]
    %v76 = vld [vmem:[#allocation7 + $0x70] sm:$0xff]
    %v77 = vld [vmem:[#allocation7 + $0x78] sm:$0xff]
    %v78 = vld [vmem:[#allocation7 + $0x80] sm:$0xff]
    %v79 = vld [vmem:[#allocation7 + $0x88] sm:$0xff]
    %v80 = vld [vmem:[#allocation7 + $0x90] sm:$0xff]
    %v81 = vld [vmem:[#allocation7 + $0x98] sm:$0xff]
    %v82 = vld [vmem:[#allocation7 + $0xa0] sm:$0xff]
    %v83 = vld [vmem:[#allocation7 + $0xa8] sm:$0xff]
    %v84 = vld [vmem:[#allocation7 + $0xb0] sm:$0xff]
    %v85 = vld [vmem:[#allocation7 + $0xb8] sm:$0xff]
    %v86 = vld [vmem:[#allocation7 + $0xc0] sm:$0xff]
    %v87 = vld [vmem:[#allocation7 + $0xc8] sm:$0xff]
    %v88 = vld [vmem:[#allocation7 + $0xd0] sm:$0xff]
    %v89 = vld [vmem:[#allocation7 + $0xd8] sm:$0xff]
    %v90 = vld [vmem:[#allocation7 + $0xe0] sm:$0xff]
    %v91 = vld [vmem:[#allocation7 + $0xe8] sm:$0xff]
    %v92 = vld [vmem:[#allocation7 + $0xf0] sm:$0xff]
    %v93 = vld [vmem:[#allocation7 + $0xf8] sm:$0xff]
    %v94 = vld [vmem:[#allocation7 + $0x100] sm:$0xff]
    %v95 = vld [vmem:[#allocation7 + $0x110] sm:$0xff]
    %v96 = vld [vmem:[#allocation7 + $0x120] sm:$0xff]
    %v97 = vld [vmem:[#allocation7 + $0x130] sm:$0xff]
    %v98 = vld [vmem:[#allocation7 + $0x140] sm:$0xff]
    %v99 = vld [vmem:[#allocation7 + $0x150] sm:$0xff]
    %v100 = vld [vmem:[#allocation7 + $0x160] sm:$0xff]
    %v101 = vld [vmem:[#allocation7 + $0x170] sm:$0xff]
    %v102 = vld [vmem:[#allocation7 + $0x180] sm:$0xff]
    %v103 = vld [vmem:[#allocation7 + $0x190] sm:$0xff]
    %v104 = vld [vmem:[#allocation7 + $0x1a0] sm:$0xff]
    %v105 = vld [vmem:[#allocation7 + $0x1b0] sm:$0xff]
    %v106 = vld [vmem:[#allocation7 + $0x1c0] sm:$0xff]
    %v107 = vld [vmem:[#allocation7 + $0x1d0] sm:$0xff]
    %v108 = vld [vmem:[#allocation7 + $0x1e0] sm:$0xff]
    %v109 = vld [vmem:[#allocation7 + $0x1f0] sm:$0xff]
    %v110 = vld [vmem:[#allocation7 + $0x200] sm:$0xff]
    %v111 = vld [vmem:[#allocation7 + $0x210] sm:$0xff]
    %v112 = vld [vmem:[#allocation7 + $0x220] sm:$0xff]
    %v113 = vld [vmem:[#allocation7 + $0x230] sm:$0xff]
    %v114 = vld [vmem:[#allocation7 + $0x240] sm:$0xff]
    %v115 = vld [vmem:[#allocation7 + $0x250] sm:$0xff]
    %v116 = vld [vmem:[#allocation7 + $0x260] sm:$0xff]
    %v117 = vld [vmem:[#allocation7 + $0x270] sm:$0xff]
    %v118 = vld [vmem:[#allocation7 + $0x280] sm:$0xff]
    %v119 = vld [vmem:[#allocation7 + $0x290] sm:$0xff]
    %v120 = vld [vmem:[#allocation7 + $0x2a0] sm:$0xff]
    %v121 = vld [vmem:[#allocation7 + $0x2b0] sm:$0xff]
    %v122 = vld [vmem:[#allocation7 + $0x2c0] sm:$0xff]
    %v123 = vld [vmem:[#allocation7 + $0x2d0] sm:$0xff]
    %v124 = vld [vmem:[#allocation7 + $0x2e0] sm:$0xff]
    %v125 = vld [vmem:[#allocation7 + $0x2f0] sm:$0xff]
    %v126 = vld [vmem:[#allocation7 + $0x300] sm:$0xff]
    %v127 = vld [vmem:[#allocation7 + $0x310] sm:$0xff]
    %v128 = vld [vmem:[#allocation7 + $0x320] sm:$0xff]
    %v129 = vld [vmem:[#allocation7 + $0x330] sm:$0xff]
    %v130 = vld [vmem:[#allocation7 + $0x340] sm:$0xff]
    %v131 = vld [vmem:[#allocation7 + $0x350] sm:$0xff]
    %v132 = vld [vmem:[#allocation7 + $0x360] sm:$0xff]
    %v133 = vld [vmem:[#allocation7 + $0x370] sm:$0xff]
    %v134 = vld [vmem:[#allocation7 + $0x380] sm:$0xff]
    %v135 = vld [vmem:[#allocation7 + $0x390] sm:$0xff]
    %v136 = vld [vmem:[#allocation7 + $0x3a0] sm:$0xff]
    %v137 = vld [vmem:[#allocation7 + $0x3b0] sm:$0xff]
    %v138 = vld [vmem:[#allocation7 + $0x3c0] sm:$0xff]
    %v139 = vld [vmem:[#allocation7 + $0x3d0] sm:$0xff]
    %v140 = vld [vmem:[#allocation7 + $0x3e0] sm:$0xff]
    %v141 = vld [vmem:[#allocation7 + $0x3f0] sm:$0xff]
    %v142 = vld [vmem:[%s3] sm:$0xff]
    %v143 = vlaneseq
    %v144 = vshrl.u32 %v143, 7
    %v145 = vsub.s32 0, %v144
    %v146 = vrot.slane %v142, %v145
    %vm147 = vcmask 261120
    %v149 = vsel %vm147, %v57, 0
    %151 = vmatprep.subr.mxu0 0.0
    %152 = vmatpush1.msra.mxu0 %v58
    %153 = vmatprep.subr.mxu0 0.0
    %154 = vmatpush1.msra.mxu0 %v59
    %155 = vmatprep.subr.mxu0 0.0
    %156 = vmatpush1.msra.mxu0 %v60
    %157 = vmatprep.subr.mxu0 0.0
    %158 = vmatpush1.msra.mxu0 %v61
    %159 = vmatprep.subr.mxu0 0.0
    %160 = vmatpush1.msra.mxu0 0.0
    %161 = vmatprep.subr.mxu0 0.0
    %162 = vmatpush1.msra.mxu0 0.0
    %163 = vmatprep.subr.mxu0 0.0
    %164 = vmatpush1.msra.mxu0 0.0
    %165 = vmatprep.subr.mxu0 0.0
    %166 = vmatpush1.msra.mxu0 0.0
    %167 = vmatprep.subr.mxu0 0.0
    %168 = vmatpush1.msra.mxu0 0.0
    %169 = vmatprep.subr.mxu0 0.0
    %170 = vmatpush1.msra.mxu0 0.0
    %171 = vmatprep.subr.mxu0 0.0
    %172 = vmatpush1.msra.mxu0 0.0
    %173 = vmatprep.subr.mxu0 0.0
    %174 = vmatpush1.msra.mxu0 0.0
    %175 = vmatprep.subr.mxu0 0.0
    %176 = vmatpush1.msra.mxu0 0.0
    %177 = vmatprep.subr.mxu0 0.0
    %178 = vmatpush1.msra.mxu0 0.0
    %179 = vmatprep.subr.mxu0 0.0
    %180 = vmatpush1.msra.mxu0 0.0
    %181 = vmatprep.subr.mxu0 0.0
    %182 = vmatpush1.msra.mxu0 0.0
    %183 = vmatprep.subr.mxu0 0.0
    %184 = vmatpush1.msra.mxu0 0.0
    %185 = vmatprep.subr.mxu0 0.0
    %186 = vmatpush1.msra.mxu0 0.0
    %187 = vmatprep.subr.mxu0 0.0
    %188 = vmatpush1.msra.mxu0 0.0
    %189 = vmatprep.subr.mxu0 0.0
    %190 = vmatpush1.msra.mxu0 0.0
    %191 = vmatprep.subr.mxu0 0.0
    %192 = vmatpush1.msra.mxu0 0.0
    %193 = vmatprep.subr.mxu0 0.0
    %194 = vmatpush1.msra.mxu0 0.0
    %195 = vmatprep.subr.mxu0 0.0
    %196 = vmatpush1.msra.mxu0 0.0
    %197 = vmatprep.subr.mxu0 0.0
    %198 = vmatpush1.msra.mxu0 0.0
    %199 = vmatprep.subr.mxu0 0.0
    %200 = vmatpush1.msra.mxu0 0.0
    %201 = vmatprep.subr.mxu0 0.0
    %202 = vmatpush1.msra.mxu0 0.0
    %203 = vmatprep.subr.mxu0 0.0
    %204 = vmatpush1.msra.mxu0 0.0
    %205 = vmatprep.subr.mxu0 0.0
    %206 = vmatpush1.msra.mxu0 0.0
    %207 = vmatprep.subr.mxu0 0.0
    %208 = vmatpush1.msra.mxu0 0.0
    %209 = vmatprep.subr.mxu0 0.0
    %210 = vmatpush1.msra.mxu0 0.0
    %211 = vmatprep.subr.mxu0 0.0
    %212 = vmatpush1.msra.mxu0 0.0
    %213 = vmatprep.subr.mxu0 0.0
    %214 = vmatpush1.msra.mxu0 0.0
    %215 = vmatprep.mubr.f32.mxu0 0.0
    %216 = vmatmul.mubr.f32.gmra.mrb[0].mxu0 %v149
    %v217 = vpop.f32.mrb[0].mxu0
    %v218 = vadd.f32 %v146, %v217
    %v219 = vpop.f32.mrb[0].mxu0
    %220 = vdwg.mxu0
    %v221 = vmax.f32 %v218, 0.0
    %v223 = vlaneseq
    %v224 = vshrl.u32 %v223, 7
    %v225 = vsub.s32 1, %v224
    %v226 = vrot.slane %v142, %v225
    %v227 = vlaneseq
    %v228 = vshrl.u32 %v227, 7
    %v229 = vsub.s32 5, %v228
    %v230 = vrot.slane %v142, %v229
    %v233 = vlaneseq
    %v234 = vshrl.u32 %v233, 7
    %v235 = vsub.s32 1, %v234
    %v236 = vrot.slane %v226, %v235
    %v237 = vlaneseq
    %v238 = vshrl.u32 %v237, 7
    %v239 = vsub.s32 1, %v238
    %v240 = vrot.slane %v230, %v239
    %241 = vmatprep.subr.mxu0 %v63
    %242 = vmatpush1.msra.mxu0 %v62
    %243 = vmatprep.subr.mxu0 %v65
    %244 = vmatpush1.msra.mxu0 %v64
    %245 = vmatprep.subr.mxu0 %v67
    %246 = vmatpush1.msra.mxu0 %v66
    %247 = vmatprep.subr.mxu0 %v69
    %248 = vmatpush1.msra.mxu0 %v68
    %249 = vmatprep.subr.mxu0 %v71
    %250 = vmatpush1.msra.mxu0 %v70
    %251 = vmatprep.subr.mxu0 %v73
    %252 = vmatpush1.msra.mxu0 %v72
    %253 = vmatprep.subr.mxu0 %v75
    %254 = vmatpush1.msra.mxu0 %v74
    %255 = vmatprep.subr.mxu0 %v77
    %256 = vmatpush1.msra.mxu0 %v76
    %257 = vmatprep.subr.mxu0 %v79
    %258 = vmatpush1.msra.mxu0 %v78
    %259 = vmatprep.subr.mxu0 %v81
    %260 = vmatpush1.msra.mxu0 %v80
    %261 = vmatprep.subr.mxu0 %v83
    %262 = vmatpush1.msra.mxu0 %v82
    %263 = vmatprep.subr.mxu0 %v85
    %264 = vmatpush1.msra.mxu0 %v84
    %265 = vmatprep.subr.mxu0 %v87
    %266 = vmatpush1.msra.mxu0 %v86
    %267 = vmatprep.subr.mxu0 %v89
    %268 = vmatpush1.msra.mxu0 %v88
    %269 = vmatprep.subr.mxu0 %v91
    %270 = vmatpush1.msra.mxu0 %v90
    %271 = vmatprep.subr.mxu0 %v93
    %272 = vmatpush1.msra.mxu0 %v92
    %273 = vmatprep.subr.mxu0 0.0
    %274 = vmatpush1.msra.mxu0 0.0
    %275 = vmatprep.subr.mxu0 0.0
    %276 = vmatpush1.msra.mxu0 0.0
    %277 = vmatprep.subr.mxu0 0.0
    %278 = vmatpush1.msra.mxu0 0.0
    %279 = vmatprep.subr.mxu0 0.0
    %280 = vmatpush1.msra.mxu0 0.0
    %281 = vmatprep.subr.mxu0 0.0
    %282 = vmatpush1.msra.mxu0 0.0
    %283 = vmatprep.subr.mxu0 0.0
    %284 = vmatpush1.msra.mxu0 0.0
    %285 = vmatprep.subr.mxu0 0.0
    %286 = vmatpush1.msra.mxu0 0.0
    %287 = vmatprep.subr.mxu0 0.0
    %288 = vmatpush1.msra.mxu0 0.0
    %289 = vmatprep.subr.mxu0 0.0
    %290 = vmatpush1.msra.mxu0 0.0
    %291 = vmatprep.subr.mxu0 0.0
    %292 = vmatpush1.msra.mxu0 0.0
    %293 = vmatprep.subr.mxu0 0.0
    %294 = vmatpush1.msra.mxu0 0.0
    %295 = vmatprep.subr.mxu0 0.0
    %296 = vmatpush1.msra.mxu0 0.0
    %297 = vmatprep.subr.mxu0 0.0
    %298 = vmatpush1.msra.mxu0 0.0
    %299 = vmatprep.subr.mxu0 0.0
    %300 = vmatpush1.msra.mxu0 0.0
    %301 = vmatprep.subr.mxu0 0.0
    %302 = vmatpush1.msra.mxu0 0.0
    %303 = vmatprep.subr.mxu0 0.0
    %304 = vmatpush1.msra.mxu0 0.0
    %305 = vmatprep.mubr.f32.mxu0 0.0
    %306 = vmatmul.mubr.f32.gmra.mrb[0].mxu0 %v221
    %v307 = vpop.f32.mrb[0].mxu0
    %v308 = vadd.f32 %v236, %v307
    %v309 = vpop.f32.mrb[0].mxu0
    %v310 = vadd.f32 %v240, %v309
    %311 = vdwg.mxu0
    %v312 = vmax.f32 %v308, 0.0
    %v313 = vmax.f32 %v310, 0.0
    %v314 = vlaneseq
    %v315 = vshrl.u32 %v314, 7
    %v316 = vsub.s32 2, %v315
    %v317 = vrot.slane %v142, %v316
    %318 = vmatprep.subr.mxu0 0.0
    %319 = vmatpush1.msra.mxu0 %v94
    %320 = vmatprep.subr.mxu0 0.0
    %321 = vmatpush1.msra.mxu0 %v95
    %322 = vmatprep.subr.mxu0 0.0
    %323 = vmatpush1.msra.mxu0 %v96
    %324 = vmatprep.subr.mxu0 0.0
    %325 = vmatpush1.msra.mxu0 %v97
    %326 = vmatprep.subr.mxu0 0.0
    %327 = vmatpush1.msra.mxu0 %v98
    %328 = vmatprep.subr.mxu0 0.0
    %329 = vmatpush1.msra.mxu0 %v99
    %330 = vmatprep.subr.mxu0 0.0
    %331 = vmatpush1.msra.mxu0 %v100
    %332 = vmatprep.subr.mxu0 0.0
    %333 = vmatpush1.msra.mxu0 %v101
    %334 = vmatprep.subr.mxu0 0.0
    %335 = vmatpush1.msra.mxu0 %v102
    %336 = vmatprep.subr.mxu0 0.0
    %337 = vmatpush1.msra.mxu0 %v103
    %338 = vmatprep.subr.mxu0 0.0
    %339 = vmatpush1.msra.mxu0 %v104
    %340 = vmatprep.subr.mxu0 0.0
    %341 = vmatpush1.msra.mxu0 %v105
    %342 = vmatprep.subr.mxu0 0.0
    %343 = vmatpush1.msra.mxu0 %v106
    %344 = vmatprep.subr.mxu0 0.0
    %345 = vmatpush1.msra.mxu0 %v107
    %346 = vmatprep.subr.mxu0 0.0
    %347 = vmatpush1.msra.mxu0 %v108
    %348 = vmatprep.subr.mxu0 0.0
    %349 = vmatpush1.msra.mxu0 %v109
    %350 = vmatprep.subr.mxu0 0.0
    %351 = vmatpush1.msra.mxu0 %v110
    %352 = vmatprep.subr.mxu0 0.0
    %353 = vmatpush1.msra.mxu0 %v111
    %354 = vmatprep.subr.mxu0 0.0
    %355 = vmatpush1.msra.mxu0 %v112
    %356 = vmatprep.subr.mxu0 0.0
    %357 = vmatpush1.msra.mxu0 %v113
    %358 = vmatprep.subr.mxu0 0.0
    %359 = vmatpush1.msra.mxu0 %v114
    %360 = vmatprep.subr.mxu0 0.0
    %361 = vmatpush1.msra.mxu0 %v115
    %362 = vmatprep.subr.mxu0 0.0
    %363 = vmatpush1.msra.mxu0 %v116
    %364 = vmatprep.subr.mxu0 0.0
    %365 = vmatpush1.msra.mxu0 %v117
    %366 = vmatprep.subr.mxu0 0.0
    %367 = vmatpush1.msra.mxu0 %v118
    %368 = vmatprep.subr.mxu0 0.0
    %369 = vmatpush1.msra.mxu0 %v119
    %370 = vmatprep.subr.mxu0 0.0
    %371 = vmatpush1.msra.mxu0 %v120
    %372 = vmatprep.subr.mxu0 0.0
    %373 = vmatpush1.msra.mxu0 %v121
    %374 = vmatprep.subr.mxu0 0.0
    %375 = vmatpush1.msra.mxu0 %v122
    %376 = vmatprep.subr.mxu0 0.0
    %377 = vmatpush1.msra.mxu0 %v123
    %378 = vmatprep.subr.mxu0 0.0
    %379 = vmatpush1.msra.mxu0 %v124
    %380 = vmatprep.subr.mxu0 0.0
    %381 = vmatpush1.msra.mxu0 %v125
    %382 = vmatprep.mubr.f32.mxu0 %v313
    %383 = vmatmul.mubr.f32.gmra.mrb[0].mxu0 %v312
    %v384 = vpop.f32.mrb[0].mxu0
    %v385 = vadd.f32 %v317, %v384
    %v386 = vpop.f32.mrb[0].mxu0
    %387 = vdwg.mxu0
    %v388 = vmax.f32 %v385, 0.0
    %v389 = vlaneseq
    %v390 = vshrl.u32 %v389, 7
    %v391 = vsub.s32 3, %v390
    %v392 = vrot.slane %v142, %v391
    %393 = vmatprep.subr.mxu0 0.0
    %394 = vmatpush1.msra.mxu0 %v126
    %395 = vmatprep.subr.mxu0 0.0
    %396 = vmatpush1.msra.mxu0 %v127
    %397 = vmatprep.subr.mxu0 0.0
    %398 = vmatpush1.msra.mxu0 %v128
    %399 = vmatprep.subr.mxu0 0.0
    %400 = vmatpush1.msra.mxu0 %v129
    %401 = vmatprep.subr.mxu0 0.0
    %402 = vmatpush1.msra.mxu0 %v130
    %403 = vmatprep.subr.mxu0 0.0
    %404 = vmatpush1.msra.mxu0 %v131
    %405 = vmatprep.subr.mxu0 0.0
    %406 = vmatpush1.msra.mxu0 %v132
    %407 = vmatprep.subr.mxu0 0.0
    %408 = vmatpush1.msra.mxu0 %v133
    %409 = vmatprep.subr.mxu0 0.0
    %410 = vmatpush1.msra.mxu0 %v134
    %411 = vmatprep.subr.mxu0 0.0
    %412 = vmatpush1.msra.mxu0 %v135
    %413 = vmatprep.subr.mxu0 0.0
    %414 = vmatpush1.msra.mxu0 %v136
    %415 = vmatprep.subr.mxu0 0.0
    %416 = vmatpush1.msra.mxu0 %v137
    %417 = vmatprep.subr.mxu0 0.0
    %418 = vmatpush1.msra.mxu0 %v138
    %419 = vmatprep.subr.mxu0 0.0
    %420 = vmatpush1.msra.mxu0 %v139
    %421 = vmatprep.subr.mxu0 0.0
    %422 = vmatpush1.msra.mxu0 %v140
    %423 = vmatprep.subr.mxu0 0.0
    %424 = vmatpush1.msra.mxu0 %v141
    %425 = vmatprep.subr.mxu0 0.0
    %426 = vmatpush1.msra.mxu0 0.0
    %427 = vmatprep.subr.mxu0 0.0
    %428 = vmatpush1.msra.mxu0 0.0
    %429 = vmatprep.subr.mxu0 0.0
    %430 = vmatpush1.msra.mxu0 0.0
    %431 = vmatprep.subr.mxu0 0.0
    %432 = vmatpush1.msra.mxu0 0.0
    %433 = vmatprep.subr.mxu0 0.0
    %434 = vmatpush1.msra.mxu0 0.0
    %435 = vmatprep.subr.mxu0 0.0
    %436 = vmatpush1.msra.mxu0 0.0
    %437 = vmatprep.subr.mxu0 0.0
    %438 = vmatpush1.msra.mxu0 0.0
    %439 = vmatprep.subr.mxu0 0.0
    %440 = vmatpush1.msra.mxu0 0.0
    %441 = vmatprep.subr.mxu0 0.0
    %442 = vmatpush1.msra.mxu0 0.0
    %443 = vmatprep.subr.mxu0 0.0
    %444 = vmatpush1.msra.mxu0 0.0
    %445 = vmatprep.subr.mxu0 0.0
    %446 = vmatpush1.msra.mxu0 0.0
    %447 = vmatprep.subr.mxu0 0.0
    %448 = vmatpush1.msra.mxu0 0.0
    %449 = vmatprep.subr.mxu0 0.0
    %450 = vmatpush1.msra.mxu0 0.0
    %451 = vmatprep.subr.mxu0 0.0
    %452 = vmatpush1.msra.mxu0 0.0
    %453 = vmatprep.subr.mxu0 0.0
    %454 = vmatpush1.msra.mxu0 0.0
    %455 = vmatprep.subr.mxu0 0.0
    %456 = vmatpush1.msra.mxu0 0.0
    %457 = vmatprep.mubr.f32.mxu0 0.0
    %458 = vmatmul.mubr.f32.gmra.mrb[0].mxu0 %v388
    %v459 = vpop.f32.mrb[0].mxu0
    %v460 = vadd.f32 %v392, %v459
    %v461 = vpop.f32.mrb[0].mxu0
    %462 = vdwg.mxu0
    %v463 = vlaneseq
    %v464 = vand.u32 %v463, 127
    %vm465 = vcmp.lt.s32.totalorder %v464, 5
    %vm466 = vcmp.lt.s32.totalorder %v464, 8
    %vm467 = vmxor %vm465, 1
    %vm468 = vmand %vm466, %vm467
    %v469 = vsel %vm465, %v460, -inf
    %470 = vmax.xlane.f32.xlu0 %v469
    %v471 = vpop.xlane.xlu0 %470
    %v472 = vsel %vm468, %v460, -inf
    %473 = vmax.xlane.f32.xlu0 %v472
    %v474 = vpop.xlane.xlu0 %473
    %v475 = vsel %vm465, %v471, %v474
    %v476 = vsub.f32 %v460, %v475
    %v477 = vmul.f32 %v476, 1.442695
    %v478 = vpow.pop %v477
    %v479 = vsel %vm466, %v478, 0.0
    %v480 = vsel %vm465, %v479, 0.0
    %481 = vadd.xlane.f32.xlu0 %v480
    %v482 = vpop.xlane.xlu0 %481
    %483 = vadd.xlane.f32.xlu0 %v479
    %v484 = vpop.xlane.xlu0 %483
    %v485 = vsub.f32 %v484, %v482
    %v486 = vrcp.pop %v482
    %v487 = vrcp.pop %v485
    %v488 = vsel %vm465, %v486, %v487
    %v489 = vmul.f32 %v479, %v488
    %v490 = vsel %vm466, %v489, %v460
    %491 = vst [vmem:[#allocation8] sm:$0xff] %v490
    // Predicated region
    $region30: #{tpu_custom_call.1} parent=1 // pred_check
      _
    $region31: #{tpu_custom_call.1} parent=1 // pred_check_branch
      %493 = sbr.rel (0) target = $region33
    $region32: #{tpu_custom_call.1} parent=1 // pred_region
      %s495 = ssub.s32 128, 128
      %496 = vsyncadd [#allocation4], %s495
      %s498 = sshll.u32 [#allocation8], 4
      %s499 = int_to_ptr.vmem [resolvable:$true] %s498
      %501 = dma.vmem_to_hbm [thread:$0]  %s499, 128, %s4, [#allocation4]
    $region33: #{tpu_custom_call.1} parent=1 // pred_fallthru
      _
    // Predicated region
    $region34: #{tpu_custom_call.1} parent=1 // pred_check
      _
    $region35: #{tpu_custom_call.1} parent=1 // pred_check_branch
      %503 = sbr.rel (0) target = $region37
    $region36: #{tpu_custom_call.1} parent=1 // pred_region
      %504 = dma.done [#allocation4], 128
    $region37: #{tpu_custom_call.1} parent=1 // pred_fallthru
      _
    %505 = vsyncpa [#allocation3], 1
    %506 = vsyncpa [#allocation6], 1
    %507 = vsyncpa [#allocation4], 1

</llo_original>
